<compile_context>
chip_gen: v6e
topology: v6e:2x2x1
jax: 0.10.0
libtpu: 0.0.40
codegen_flags: <defaults>
</compile_context>

<pallas_src>
import functools

import jax
import jax.numpy as jnp
from jax.experimental import pallas as pl
from jax.experimental.pallas import tpu as pltpu


def _round_up(x, m):
    return ((x + m - 1) // m) * m


def _gp_partial_sumsq_kernel(x_ref, acc_ref, *, tile_f, ff_valid, needs_mask):
    """Accumulate per-row partial sums of squares into a (tile_r, 128) block.

    x_ref  : VMEM (tile_r, tile_f) input tile, native dtype.
    acc_ref: VMEM (tile_r, 128) f32 output block, resident across the feature
             (reduction) grid axis.
    Static (closure) params: tile_f, ff_valid (true feature count per row),
    needs_mask (True iff the last feature block is ragged).
    """
    @pl.when(pl.program_id(1) == 0)
    def _init():
        acc_ref[...] = jnp.zeros_like(acc_ref)

    tile_r = x_ref.shape[0]
    n_chunks = tile_f // 128                  # static
    n_acc = min(4, n_chunks)                  # independent accumulators (hide add latency)

    if needs_mask:
        lane = jax.lax.broadcasted_iota(jnp.int32, (tile_r, 128), 1)
        # Valid columns remaining at the start of this feature block.
        limit = ff_valid - pl.program_id(1) * tile_f

    accs = [jnp.zeros((tile_r, 128), jnp.float32) for _ in range(n_acc)]
    for c in range(n_chunks):                 # static unroll: load -> cast -> square -> add
        t = x_ref[:, c * 128:(c + 1) * 128].astype(jnp.float32)
        if needs_mask:
            # Zero out-of-range lanes (OOB block reads are garbage, mask before squaring).
            t = jnp.where(lane < limit - c * 128, t, 0.0)
        accs[c % n_acc] = accs[c % n_acc] + t * t

    # Tree-add the independent accumulators once per grid step.
    while len(accs) > 1:
        accs = [a + b for a, b in zip(accs[::2], accs[1::2])] + (
            accs[-1:] if len(accs) % 2 else [])
    acc_ref[...] += accs[0]


def _gp_forward(dydx):
    """Pallas hot path: returns (loss, per-sample sumsq) with
    loss = mean((||dydx_b||_2 - 1)^2)."""
    b = dydx.shape[0]
    flat = dydx.reshape(b, -1)                # == dydx.view(B, -1); metadata-only
    f_total = flat.shape[1]
    itemsize = flat.dtype.itemsize
    sub = max(8, 32 // itemsize)              # sublane granularity (8 f32, 16 bf16)

    # Fold small batches into more rows, only when the split is exact (no pad),
    # so the 'parallel' row axis gets >= 2 blocks (keeps both v7x TCs streaming).
    fold = 1
    for target_rows in (2 * sub, sub):
        if b < target_rows and target_rows % b == 0:
            cand = target_rows // b
            if f_total % cand == 0 and (f_total // cand) % 128 == 0:
                fold = cand
                break
    rows = b * fold
    ff = f_total // fold
    folded = flat.reshape(rows, ff)           # contiguous -> metadata-only reshape

    # --- Tiling -------------------------------------------------------------
    TARGET_BLOCK_BYTES = 2 * 1024 * 1024      # ~2 MiB/block: amortizes grid-step
                                              # overhead; 2x buffers << 32 MiB scoped
                                              # VMEM (safe on v7x's 64 MiB too).
    MAX_CHUNKS = 256                          # cap on unrolled 128-lane chunks

    tile_r = rows if rows < sub else sub
    ff128 = _round_up(ff, 128)
    tile_f = min(ff128,
                 max(128, (TARGET_BLOCK_BYTES // (tile_r * itemsize)) // 128 * 128),
                 MAX_CHUNKS * 128)
    # Prefer a slightly smaller tile that divides ff exactly: removes the
    # in-kernel tail mask at negligible block-size cost.
    if ff % 128 == 0 and ff % tile_f != 0:
        cand = tile_f
        while cand > 128 and ff % cand != 0:
            cand -= 128
        if cand >= tile_f // 2:
            tile_f = cand
    # Spend leftover budget on a wider row block, but keep >= 2 row blocks so the
    # 'parallel' axis can still be split across TensorCores.
    if rows >= 2 * sub and tile_r * tile_f * itemsize < TARGET_BLOCK_BYTES:
        by_budget = (TARGET_BLOCK_BYTES // (tile_f * itemsize)) // sub * sub
        by_parallel = (rows // 2) // sub * sub
        tile_r = int(max(sub, min(by_budget, by_parallel)))

    needs_mask = (ff % tile_f) != 0
    grid = (pl.cdiv(rows, tile_r), pl.cdiv(ff, tile_f))

    kernel = functools.partial(_gp_partial_sumsq_kernel,
                               tile_f=tile_f, ff_valid=ff, needs_mask=needs_mask)

    partial = pl.pallas_call(
        kernel,
        out_shape=jax.ShapeDtypeStruct((rows, 128), jnp.float32),
        grid=grid,
        in_specs=[pl.BlockSpec((tile_r, tile_f), lambda r, f: (r, f))],
        out_specs=pl.BlockSpec((tile_r, 128), lambda r, f: (r, 0)),
        compiler_params=pltpu.CompilerParams(
            dimension_semantics=("parallel", "arbitrary"),
            vmem_limit_bytes=32 * 1024 * 1024,
        ),
        cost_estimate=pl.CostEstimate(
            flops=2 * rows * ff,
            transcendentals=0,
            bytes_accessed=rows * ff * itemsize + rows * 128 * 4,
        ),
    )(folded)

    # Tiny epilogue in JAX: one cross-lane reduce + sqrt + penalty + mean.
    sumsq = jnp.sum(partial, axis=1).reshape(b, fold).sum(axis=1)   # (B,)
    l2 = jnp.sqrt(sumsq)
    loss = jnp.mean((l2 - 1.0) ** 2)
    return loss, sumsq


@jax.custom_vjp
def gradient_penalty_from_grad(dydx):
    """mean((||dydx per-sample||_2 - 1)^2) — Pallas hot path."""
    loss, _ = _gp_forward(dydx)
    return loss


def _gp_fwd_rule(dydx):
    loss, sumsq = _gp_forward(dydx)
    return loss, (dydx, sumsq)        # reuse sumsq: no second reduction pass in bwd


def _gp_bwd_rule(res, g):
    # d/d(dydx) mean_b((||d_b|| - 1)^2) = (2/B) * (1 - 1/||d_b||) * d_b
    dydx, sumsq = res
    b = dydx.shape[0]
    norm = jnp.sqrt(sumsq)                                   # (B,) from forward residual
    safe = jnp.maximum(norm, jnp.float32(1e-12))             # guard zero-norm rows
    scale = (2.0 / b) * (1.0 - 1.0 / safe) * g               # (B,)
    bshape = (b,) + (1,) * (dydx.ndim - 1)
    d = scale.reshape(bshape).astype(jnp.float32) * dydx.astype(jnp.float32)
    return (d.astype(dydx.dtype),)


gradient_penalty_from_grad.defvjp(_gp_fwd_rule, _gp_bwd_rule)


def gradient_penalty_loss(critic_fn, x):
    """JAX equivalent of GradientPaneltyLoss.forward(y, x).

    PyTorch passes (y, x) connected by an autograd graph; in JAX the graph is
    the function itself, so we take the critic function and x, and reproduce
    torch.autograd.grad(y, x, grad_outputs=ones_like(y)) with jax.vjp.
    """
    y, vjp_fn = jax.vjp(critic_fn, x)
    weight = jnp.ones_like(y)                 # grad_outputs = ones_like(y)
    (dydx,) = vjp_fn(weight)                  # TODO(synk): autograd graph walk has no Pallas equivalent; done with jax.vjp glue.
    return gradient_penalty_from_grad(dydx)


if __name__ == "__main__":
    key = jax.random.PRNGKey(0)
    kx, k1, k2 = jax.random.split(key, 3)

    # Small shapes consistent with an NCHW image input.
    B, C, H, W = 2, 4, 16, 16
    F_dim = C * H * W
    hidden = 32

    x = jax.random.normal(kx, (B, C, H, W), dtype=jnp.float32)

    # Deterministic synthetic "critic" producing y from x (stand-in for the
    # external discriminator whose graph PyTorch would carry in `y`).
    W1 = 0.05 * jax.random.normal(k1, (F_dim, hidden), dtype=jnp.float32)
    W2 = 0.05 * jax.random.normal(k2, (hidden, 1), dtype=jnp.float32)

    def critic(x_nchw):
        xf = x_nchw.reshape(x_nchw.shape[0], -1)     # (B, F)
        return jnp.tanh(xf @ W1) @ W2                # (B, 1)

    loss = gradient_penalty_loss(critic, x)
    loss = jax.block_until_ready(loss)

    # Pure-JAX reference of the exact PyTorch forward semantics.
    def ref_loss(xv):
        y, vjp_fn = jax.vjp(critic, xv)
        (d,) = vjp_fn(jnp.ones_like(y))
        d = d.reshape(d.shape[0], -1)
        n = jnp.sqrt(jnp.sum(d * d, axis=1))
        return jnp.mean((n - 1.0) ** 2)

    ref = jax.block_until_ready(ref_loss(x))
    assert jnp.allclose(loss, ref, rtol=1e-5, atol=1e-5), (loss, ref)
    print("KERNEL_OK")
</pallas_src>

<mosaic_0001>
module attributes {stable_mosaic.version = 11 : i64} {
  func.func @_gp_partial_sumsq_kernel(%arg0: i32, %arg1: i32, %arg2: memref<8x128xf32, #tpu.memory_space<vmem>>, %arg3: memref<8x128xf32, #tpu.memory_space<vmem>>) attributes {dimension_semantics = [#tpu.dimension_semantics<parallel>, #tpu.dimension_semantics<arbitrary>], iteration_bounds = array<i64: 2, 1>, scalar_prefetch = 0 : i64, scratch_operands = 0 : i64, tpu.core_type = #tpu.core_type<tc>, window_params = [{transform_indices = @transform_0, window_bounds = array<i64: 8, 128>}, {transform_indices = @transform_1, window_bounds = array<i64: 8, 128>}]} {
    %c0_i32 = arith.constant 0 : i32
    %0 = arith.cmpi eq, %arg1, %c0_i32 : i32
    %1 = arith.extui %0 : i1 to i32
    %c0_i32_0 = arith.constant 0 : i32
    %2 = arith.cmpi ne, %1, %c0_i32_0 : i32
    scf.if %2 {
      %cst_6 = arith.constant 0.000000e+00 : f32
      %10 = vector.broadcast %cst_6 : f32 to vector<8x128xf32>
      %c0_7 = arith.constant 0 : index
      %c0_8 = arith.constant 0 : index
      %11 = vector.load %arg3[%c0_7, %c0_8] : memref<8x128xf32, #tpu.memory_space<vmem>>, vector<8x128xf32>
      tpu.vector_store %arg3[%c0_7, %c0_8], %10 {strides = array<i32>} : memref<8x128xf32, #tpu.memory_space<vmem>>, vector<8x128xf32>,
    } else {
    }
    %cst = arith.constant 0.000000e+00 : f32
    %3 = vector.broadcast %cst : f32 to vector<8x128xf32>
    %c0 = arith.constant 0 : index
    %c0_1 = arith.constant 0 : index
    %4 = vector.load %arg2[%c0, %c0_1] : memref<8x128xf32, #tpu.memory_space<vmem>>, vector<8x128xf32>
    %5 = arith.mulf %4, %4 : vector<8x128xf32>
    %6 = arith.addf %3, %5 : vector<8x128xf32>
    %c0_2 = arith.constant 0 : index
    %c0_3 = arith.constant 0 : index
    %7 = vector.load %arg3[%c0_2, %c0_3] : memref<8x128xf32, #tpu.memory_space<vmem>>, vector<8x128xf32>
    %8 = arith.addf %7, %6 : vector<8x128xf32>
    %c0_4 = arith.constant 0 : index
    %c0_5 = arith.constant 0 : index
    %9 = vector.load %arg3[%c0_4, %c0_5] : memref<8x128xf32, #tpu.memory_space<vmem>>, vector<8x128xf32>
    tpu.vector_store %arg3[%c0_4, %c0_5], %8 {strides = array<i32>} : memref<8x128xf32, #tpu.memory_space<vmem>>, vector<8x128xf32>,
    return
  }
  func.func @transform_0(%arg0: i32, %arg1: i32) -> (i32, i32) {
    %c0_i32 = arith.constant 0 : i32
    return %arg0, %arg1 : i32, i32
  }
  func.func @transform_1(%arg0: i32, %arg1: i32) -> (i32, i32) {
    %c0_i32 = arith.constant 0 : i32
    %c0_i32_0 = arith.constant 0 : i32
    return %arg0, %c0_i32 : i32, i32
  }
}

</mosaic_0001>

<llo_original>
// kernel: tpu_custom_call.1
$region0: #{tpu_custom_call.1}
  #allocation0 [shape = 'u32[]', space=smem, size = 0x4, offset = 0x4, fixed_abs, tag = 'smem constant byte address 0x4 - core index']
  #allocation1 [shape = 'u32[144,128]{1,0:T(1,128)}', space=vmem, size = 0x12000, scoped, tag = 'internal scratch']
  %s0 = inlined_call_operand.hbm [shape: f32[16,128], index: 0, kind: input, shape index: {}]
  %s1 = inlined_call_operand.hbm [shape: f32[16,128], index: 1, kind: output, shape index: {}]
  %s2 = sld [smem:[#allocation0]]
  $region45: #{tpu_custom_call.1} parent=0
    _
  %s4 = ssub.s32 1, %s2
  %s5 = scalar_select 0, %s4, %s2
  $region1: #{tpu_custom_call.1} parent=0
    #allocation2 [shape = 'u8[8192]{0}', space=vmem, size = 0x2000, scoped, tag = 'input window, operand 0']
    #allocation3 [shape = 's32[2]{0}', space=sflag, size = 0x8, scoped, tag = 'scoped memory for tpu_custom_call.1']
    #allocation4 [shape = 's32[2]{0}', space=sflag, size = 0x8, scoped, tag = 'scoped memory for tpu_custom_call.1']
    #allocation5 [shape = 'u8[8192]{0}', space=vmem, size = 0x2000, scoped, tag = 'output window, operand 0']
    %6 = vsyncpa [#allocation3], 0
    %s7 = scalar_lea.sflag [#allocation3], 1
    %8 = vsyncpa %s7, 0
    %9 = vsyncpa [#allocation4], 0
    %s10 = scalar_lea.sflag [#allocation4], 1
    %11 = vsyncpa %s10, 0
    loop: start=0, step=1, limit=4
    $region2: #{tpu_custom_call.1} parent=1 // loop_pre_header
      _
    $region3: #{tpu_custom_call.1} parent=1 // loop_header
      %s13 = sphi 0, %s17
      %p14 = scmp.ge.s32.totalorder %s13, 4
      %s20 = sphi 0, %s32
      %s21 = sphi 0, %s28
      %s22 = sphi 0, %s20
      %s23 = sphi 0, %s21
      %s24 = sphi 0, %s22
      %s25 = sphi 0, %s23
      %s37 = sphi 0, %s39
      %s40 = sphi 0, %s37
      %s41 = sphi 0, %s40
      %s57 = sphi 0, %s41
      %s63 = sphi 0, %s65
      %s66 = sphi 0, %s63
      %s67 = sphi 0, %s66
      %s83 = sphi 0, %s67
    $region4: #{tpu_custom_call.1} parent=1 // loop_header_branch
      %16 = sbr.rel (%p14) target = $region8
    $region5: #{tpu_custom_call.1} parent=1 // loop_body
      %s18 = ssub.s32 %s13, 1
      %s19 = ssub.s32 %s13, 2
      %s26 = sadd.s32 1, %s21
      %p27 = scmp.ge.s32.totalorder %s26, 1
      %s28 = scalar_select %p27, 0, %s26
      %s29 = sadd.s32 1, %s20
      %s30 = scalar_select %p27, %s29, %s20
      %p31 = scmp.ge.s32.totalorder %s30, 2
      %s32 = scalar_select %p31, 0, %s30
      %s33 = ssub.s32 %s20, %s32
      %s34 = ssub.s32 %s21, %s28
      %s35 = sor.u32 %s33, %s34
      %p36 = scmp.eq.s32.totalorder %s35, 0
      %s38 = sadd.s32 %s37, 1
      %s39 = scalar_select %p36, %s37, %s38
      %p42 = pneg %p36
      %p43 = scmp.eq.s32.totalorder %s13, 1
      %p44 = por %p42, %p43
      %p45 = scmp.ne.s32.totalorder %s37, %s40
      %p46 = scmp.eq.s32.totalorder %s13, 0
      %p47 = por %p45, %p46
      %p48 = scmp.ne.s32.totalorder %s37, %s40
      %p49 = scmp.eq.s32.totalorder %s18, 1
      %p50 = por %p48, %p49
      %p51 = scmp.ne.s32.totalorder %s40, %s41
      %p52 = scmp.eq.s32.totalorder %s18, 0
      %p53 = por %p51, %p52
      %p54 = scmp.ne.s32.totalorder %s40, %s41
      %p55 = scmp.eq.s32.totalorder %s19, 1
      %p56 = por %p54, %p55
      %p58 = scmp.ne.s32.totalorder %s41, %s57
      %p59 = scmp.eq.s32.totalorder %s19, 0
      %p60 = por %p58, %p59
      %s61 = ssub.s32 %s20, %s32
      %p62 = scmp.eq.s32.totalorder %s61, 0
      %s64 = sadd.s32 %s63, 1
      %s65 = scalar_select %p62, %s63, %s64
      %p68 = pneg %p62
      %p69 = scmp.eq.s32.totalorder %s13, 1
      %p70 = por %p68, %p69
      %p71 = scmp.ne.s32.totalorder %s63, %s66
      %p72 = scmp.eq.s32.totalorder %s13, 0
      %p73 = por %p71, %p72
      %p74 = scmp.ne.s32.totalorder %s63, %s66
      %p75 = scmp.eq.s32.totalorder %s18, 1
      %p76 = por %p74, %p75
      %p77 = scmp.ne.s32.totalorder %s66, %s67
      %p78 = scmp.eq.s32.totalorder %s18, 0
      %p79 = por %p77, %p78
      %p80 = scmp.ne.s32.totalorder %s66, %s67
      %p81 = scmp.eq.s32.totalorder %s19, 1
      %p82 = por %p80, %p81
      %p84 = scmp.ne.s32.totalorder %s67, %s83
      %p85 = scmp.eq.s32.totalorder %s19, 0
      %p86 = por %p84, %p85
      %p87 = scmp.le.s32.totalorder 1, %s13
      %p88 = scmp.lt.s32.totalorder %s13, 3
      %p89 = pnand %p87, %p88
      %p90 = pneg %p89
      // Predicated region
      $region9: #{tpu_custom_call.1} parent=5 // pred_check
        _
      $region10: #{tpu_custom_call.1} parent=5 // pred_check_branch
        %92 = sbr.rel (%p89) target = $region12
      $region11: #{tpu_custom_call.1} parent=5 // pred_region
        %s93 = ssub.s32 %s13, 1
      $region12: #{tpu_custom_call.1} parent=5 // pred_fallthru
        _
      %p94 = scmp.lt.s32.totalorder %s13, 2
      // Predicated region
      $region13: #{tpu_custom_call.1} parent=5 // pred_check
        %p95 = pneg %p94
      $region14: #{tpu_custom_call.1} parent=5 // pred_check_branch
        %97 = sbr.rel (%p95) target = $region16
      $region15: #{tpu_custom_call.1} parent=5 // pred_region
        // Predicated region
        $region17: #{tpu_custom_call.1} parent=15 // pred_check
          %p98 = pneg %p47
        $region18: #{tpu_custom_call.1} parent=15 // pred_check_branch
          %100 = sbr.rel (%p98) target = $region20
        $region19: #{tpu_custom_call.1} parent=15 // pred_region
          %s101 = sand.u32 %s37, 1
          %s102 = scalar_lea.sflag [#allocation3], %s101
          %s103 = sand.u32 %s37, 1
          %s104 = smul.addr %s103, 8
          %s105 = scalar_lea.vmem [#allocation2], %s104
          %s107 = ssub.s32 128, 128
          %108 = vsyncadd %s102, %s107
          %s109 = sadd.s32 %s21, %s20
          %s110 = smul.addr %s109, 128
          %s111 = scalar_lea.hbm %s0, %s110
          %s113 = sshll.u32 %s105, 4
          %s114 = int_to_ptr.vmem [resolvable:$true] %s113
          %116 = dma.hbm_to_vmem [thread:$0]  %s111, 128, %s114, %s102
        $region20: #{tpu_custom_call.1} parent=15 // pred_fallthru
          _
      $region16: #{tpu_custom_call.1} parent=5 // pred_fallthru
        _
      %p117 = scmp.le.s32.totalorder 1, %s13
      %p118 = scmp.lt.s32.totalorder %s13, 3
      %p119 = pnand %p117, %p118
      %p120 = pneg %p119
      // Predicated region
      $region21: #{tpu_custom_call.1} parent=5 // pred_check
        _
      $region22: #{tpu_custom_call.1} parent=5 // pred_check_branch
        %122 = sbr.rel (%p119) target = $region24
      $region23: #{tpu_custom_call.1} parent=5 // pred_region
        %s123 = ssub.s32 %s13, 1
        %s124 = sand.u32 %s40, 1
        %s125 = scalar_lea.sflag [#allocation3], %s124
        %s126 = sand.u32 %s40, 1
        %s127 = smul.addr %s126, 8
        %s128 = scalar_lea.vmem [#allocation2], %s127
        // Predicated region
        $region25: #{tpu_custom_call.1} parent=23 // pred_check
          %p129 = pneg %p53
        $region26: #{tpu_custom_call.1} parent=23 // pred_check_branch
          %131 = sbr.rel (%p129) target = $region28
        $region27: #{tpu_custom_call.1} parent=23 // pred_region
          %132 = dma.done %s125, 128
        $region28: #{tpu_custom_call.1} parent=23 // pred_fallthru
          _
        %s133 = sand.u32 %s40, 1
        %s134 = scalar_lea.sflag [#allocation3], %s133
        %s135 = sand.u32 %s40, 1
        %s136 = smul.addr %s135, 8
        %s137 = scalar_lea.vmem [#allocation2], %s136
        %p138 = pneg %p53
        %p139 = pneg %p50
        %p140 = pneg %p79
        %p141 = pneg %p76
        %s142 = sand.u32 %s66, 1
        %s143 = scalar_lea.sflag [#allocation4], %s142
        %s144 = sand.u32 %s66, 1
        %s145 = smul.addr %s144, 8
        %s146 = scalar_lea.vmem [#allocation5], %s145
        %p147 = scmp.eq.s32.totalorder %s23, 0
        // Predicated region
        $region29: #{tpu_custom_call.1} parent=23 // pred_check
          %p148 = pneg %p147
        $region30: #{tpu_custom_call.1} parent=23 // pred_check_branch
          %150 = sbr.rel (%p148) target = $region32
        $region31: #{tpu_custom_call.1} parent=23 // pred_region
          %151 = vst [vmem:[%s146] sm:$0xff] 0.0
        $region32: #{tpu_custom_call.1} parent=23 // pred_fallthru
          _
        %v152 = vld [vmem:[%s128] sm:$0xff]
        %v153 = vmul.f32 %v152, %v152
        %v154 = vadd.f32 %v153, 0.0
        %v155 = vld [vmem:[%s146] sm:$0xff]
        %v156 = vadd.f32 %v155, %v154
        %157 = vst [vmem:[%s146] sm:$0xff] %v156
        %s158 = sand.u32 %s66, 1
        %s159 = scalar_lea.sflag [#allocation4], %s158
        %s160 = sand.u32 %s66, 1
        %s161 = smul.addr %s160, 8
        %s162 = scalar_lea.vmem [#allocation5], %s161
        // Predicated region
        $region33: #{tpu_custom_call.1} parent=23 // pred_check
          %p163 = pneg %p76
        $region34: #{tpu_custom_call.1} parent=23 // pred_check_branch
          %165 = sbr.rel (%p163) target = $region36
        $region35: #{tpu_custom_call.1} parent=23 // pred_region
          %s167 = ssub.s32 128, 128
          %168 = vsyncadd %s159, %s167
          %s169 = smul.addr %s22, 128
          %s170 = scalar_lea.hbm %s1, %s169
          %s172 = sshll.u32 %s162, 4
          %s173 = int_to_ptr.vmem [resolvable:$true] %s172
          %175 = dma.vmem_to_hbm [thread:$0]  %s173, 128, %s170, %s159
        $region36: #{tpu_custom_call.1} parent=23 // pred_fallthru
          _
      $region24: #{tpu_custom_call.1} parent=5 // pred_fallthru
        _
      %p176 = scmp.le.s32.totalorder 2, %s13
      // Predicated region
      $region37: #{tpu_custom_call.1} parent=5 // pred_check
        %p177 = pneg %p176
      $region38: #{tpu_custom_call.1} parent=5 // pred_check_branch
        %179 = sbr.rel (%p177) target = $region40
      $region39: #{tpu_custom_call.1} parent=5 // pred_region
        %s180 = ssub.s32 %s13, 2
        // Predicated region
        $region41: #{tpu_custom_call.1} parent=39 // pred_check
          %p181 = pneg %p82
        $region42: #{tpu_custom_call.1} parent=39 // pred_check_branch
          %183 = sbr.rel (%p181) target = $region44
        $region43: #{tpu_custom_call.1} parent=39 // pred_region
          %s184 = sand.u32 %s67, 1
          %s185 = scalar_lea.sflag [#allocation4], %s184
          %s186 = sand.u32 %s67, 1
          %s187 = smul.addr %s186, 8
          %s188 = scalar_lea.vmem [#allocation5], %s187
          %189 = dma.done %s185, 128
        $region44: #{tpu_custom_call.1} parent=39 // pred_fallthru
          _
      $region40: #{tpu_custom_call.1} parent=5 // pred_fallthru
        _
    $region6: #{tpu_custom_call.1} parent=1 // loop_footer
      %s17 = sadd.s32 1, %s13
    $region7: #{tpu_custom_call.1} parent=1 // loop_footer_branch
      %12 = sbr.rel target = $region3
    $region8: #{tpu_custom_call.1} parent=1 // loop_exit
      _
    %190 = vsyncpa [#allocation3], 1
    %s191 = scalar_lea.sflag [#allocation3], 1
    %192 = vsyncpa %s191, 1
    %193 = vsyncpa [#allocation4], 1
    %s194 = scalar_lea.sflag [#allocation4], 1
    %195 = vsyncpa %s194, 1

</llo_original>
